<compile_context>
chip_gen: v6e
topology: v6e:2x2x1
jax: 0.10.0
libtpu: 0.0.40
codegen_flags: <defaults>
</compile_context>

<pallas_src>
import functools

import jax
import jax.numpy as jnp
from jax.experimental import pallas as pl
from jax.experimental.pallas import tpu as pltpu

BN_EPS = 1e-5


def _residual_block_kernel(xm_ref, w_ref, gb_ref, o_ref, *, wp, s0, m_true):
    """Fused conv(3x3) + BN + ReLU + BN + residual add + ReLU, (C, M) layout.

    xm_ref : (C+1, L)  rows 0..C-1: channels-first, spatially padded,
                       flattened board with `s0` columns of slack each side;
                       row C: valid-cell mask (1 at real board cells).
    w_ref  : (9, C, C) per-tap conv weights, tap t = kh*3+kw, each (Cout, Cin).
    gb_ref : (C, 2)    column 0 = BN gamma, column 1 = BN beta.
    o_ref  : (C, Gp)   output on the padded board grid (Gp lane-padded).
    """
    C, Gp = o_ref.shape
    inv_m = jnp.float32(1.0 / m_true)

    xm = xm_ref[...].astype(jnp.float32)                 # (C+1, L)
    wt = w_ref[...].astype(jnp.float32)                  # (9, C, C)

    mask = xm[C:C + 1, s0:s0 + Gp]                       # (1, Gp) valid cells

    # ---- conv1: nine accumulating (C,C)x(C,Gp) MXU matmuls on shifted views.
    acc = jnp.zeros((C, Gp), jnp.float32)
    for kh in range(3):
        for kw in range(3):
            off = (kh - 1) * wp + (kw - 1)
            tap = xm[:C, s0 + off:s0 + off + Gp]         # lane-shifted view
            acc = acc + jnp.dot(wt[kh * 3 + kw], tap,
                                preferred_element_type=jnp.float32)
    # conv1 bias intentionally omitted: a per-channel bias is exactly
    # cancelled by the BatchNorm mean subtraction that follows (output equal).

    residual = xm[:C, s0:s0 + Gp]                        # centre tap == X

    gamma = gb_ref[:, 0:1].astype(jnp.float32)           # (C, 1)
    beta = gb_ref[:, 1:2].astype(jnp.float32)            # (C, 1)

    def batchnorm(t):
        # training-mode BatchNorm2d over all valid (N,H,W) cells, per channel.
        tm = t * mask                                    # zero padded cells
        s = jnp.sum(tm, axis=1, keepdims=True)           # (C,1) lane reduce
        sq = jnp.sum(tm * t, axis=1, keepdims=True)
        mean = s * inv_m
        var = jnp.maximum(sq * inv_m - mean * mean, 0.0)  # biased variance
        scale = gamma * jax.lax.rsqrt(var + jnp.float32(BN_EPS))
        shift = beta - mean * scale
        return t * scale + shift

    y = jnp.maximum(batchnorm(acc), 0.0)   # bn + relu
    y = batchnorm(y)                       # same BN module, fresh batch stats
    y = jnp.maximum(y + residual, 0.0)     # residual add + relu

    o_ref[...] = y.astype(o_ref.dtype)


def residual_block_nhwc(x, w, b, gamma, beta):
    """x: (N, H, W, C) float32. w: (3, 3, C_in, C_out). b/gamma/beta: (C,).

    `b` (conv1 bias) is accepted for API parity but never sent to the device:
    it is mathematically cancelled by the BatchNorm that follows conv1.
    """
    del b
    N, H, W, C = x.shape
    Hp, Wp = H + 2, W + 2
    G = N * Hp * Wp                         # flattened padded-grid length
    Gp = ((G + 127) // 128) * 128           # lane-pad to a multiple of 128
    S0 = Wp + 1                             # max |tap shift| along lanes
    L = Gp + 2 * S0
    M = N * H * W                           # true BatchNorm sample count

    # channels-first, spatially padded, flattened, with tap-shift slack.
    xpad = jnp.pad(x, ((0, 0), (1, 1), (1, 1), (0, 0)))            # (N,Hp,Wp,C)
    xg = jnp.transpose(xpad, (3, 0, 1, 2)).reshape(C, G)           # (C, G)
    xg = jnp.pad(xg, ((0, 0), (S0, S0 + (Gp - G))))                # (C, L)

    # valid-cell mask packed as one extra sublane row of the same input
    # (no separate DMA, no in-kernel integer div/mod).
    mrow = jnp.zeros((N, Hp, Wp), x.dtype).at[:, 1:H + 1, 1:W + 1].set(1.0)
    mrow = jnp.pad(mrow.reshape(1, G), ((0, 0), (S0, S0 + (Gp - G))))
    xm = jnp.concatenate([xg, mrow], axis=0)                       # (C+1, L)

    wt = jnp.transpose(w, (0, 1, 3, 2)).reshape(9, C, C)           # (Cout,Cin)
    gb = jnp.stack([gamma, beta], axis=1)                          # (C, 2)

    kern = functools.partial(_residual_block_kernel, wp=Wp, s0=S0, m_true=M)

    y2d = pl.pallas_call(
        kern,
        out_shape=jax.ShapeDtypeStruct((C, Gp), x.dtype),
        grid=(1,),
        in_specs=[
            pl.BlockSpec((C + 1, L), lambda i: (0, 0)),     # x + mask row
            pl.BlockSpec((9, C, C), lambda i: (0, 0, 0)),   # conv taps
            pl.BlockSpec((C, 2), lambda i: (0, 0)),         # gamma / beta
        ],
        out_specs=pl.BlockSpec((C, Gp), lambda i: (0, 0)),
        compiler_params=pltpu.CompilerParams(
            dimension_semantics=("arbitrary",)),
    )(xm, wt, gb)

    # drop lane padding and padded-grid border, back to NHWC.
    y = y2d[:, :G].reshape(C, N, Hp, Wp)[:, :, 1:H + 1, 1:W + 1]   # (C,N,H,W)
    return jnp.transpose(y, (1, 2, 3, 0))


def residual_block_nchw(x_nchw, w, b, gamma, beta):
    """PyTorch-layout convenience entry (NCHW in / out). Pure glue."""
    x = jnp.transpose(x_nchw, (0, 2, 3, 1))
    y = residual_block_nhwc(x, w, b, gamma, beta)
    return jnp.transpose(y, (0, 3, 1, 2))


def _reference_nhwc(x, w, b, gamma, beta):
    """Pure-JAX reference with the exact PyTorch math (incl. conv bias)."""
    N, H, W, C = x.shape
    xpad = jnp.pad(x, ((0, 0), (1, 1), (1, 1), (0, 0)))
    acc = jnp.zeros((N, H, W, C), jnp.float32)
    for kh in range(3):
        for kw in range(3):
            acc = acc + jnp.einsum(
                "nhwc,cd->nhwd", xpad[:, kh:kh + H, kw:kw + W, :], w[kh, kw])
    acc = acc + b.reshape(1, 1, 1, C)

    def bn(y):
        m = jnp.mean(y, axis=(0, 1, 2), keepdims=True)
        v = jnp.mean(jnp.square(y - m), axis=(0, 1, 2), keepdims=True)
        return (y - m) / jnp.sqrt(v + BN_EPS) * gamma.reshape(1, 1, 1, C) \
            + beta.reshape(1, 1, 1, C)

    y = jnp.maximum(bn(acc), 0.0)
    y = bn(y) + x
    return jnp.maximum(y, 0.0)


if __name__ == "__main__":
    # Small shapes consistent with a Connect-Four residual block:
    # NHWC = (2, 6, 7, 8)  <->  PyTorch NCHW = (2, 8, 6, 7).
    N, H, W, C = 2, 6, 7, 8
    key = jax.random.PRNGKey(0)
    kx, kw, kb = jax.random.split(key, 3)

    x_nhwc = jax.random.normal(kx, (N, H, W, C), jnp.float32)

    # Parameter shapes match nn.Conv2d(C, C, 3) + nn.BatchNorm2d(C) defaults.
    fan_in = C * 3 * 3
    bound = 1.0 / (fan_in ** 0.5)
    w = jax.random.uniform(kw, (3, 3, C, C), jnp.float32, -bound, bound)
    b = jax.random.uniform(kb, (C,), jnp.float32, -bound, bound)
    gamma = jnp.ones((C,), jnp.float32)   # BatchNorm2d default weight
    beta = jnp.zeros((C,), jnp.float32)   # BatchNorm2d default bias

    out = jax.block_until_ready(residual_block_nhwc(x_nhwc, w, b, gamma, beta))

    # Self-check against pure-JAX reference (NHWC).
    ref = _reference_nhwc(x_nhwc, w, b, gamma, beta)
    assert out.shape == (N, H, W, C)
    assert jnp.max(jnp.abs(out - ref)) < 1e-4

    # Also exercise the PyTorch-layout wrapper once.
    x_nchw = jnp.transpose(x_nhwc, (0, 3, 1, 2))
    out_nchw = jax.block_until_ready(
        residual_block_nchw(x_nchw, w, b, gamma, beta))
    assert jnp.max(jnp.abs(out_nchw - jnp.transpose(ref, (0, 3, 1, 2)))) < 1e-4

    print("KERNEL_OK")
</pallas_src>

<mosaic_0001>
module attributes {stable_mosaic.version = 11 : i64} {
  func.func @_residual_block_kernel(%arg0: i32, %arg1: memref<9x276xf32, #tpu.memory_space<vmem>>, %arg2: memref<9x8x8xf32, #tpu.memory_space<vmem>>, %arg3: memref<8x2xf32, #tpu.memory_space<vmem>>, %arg4: memref<8x256xf32, #tpu.memory_space<vmem>>) attributes {dimension_semantics = [#tpu.dimension_semantics<arbitrary>], iteration_bounds = array<i64: 1>, scalar_prefetch = 0 : i64, scratch_operands = 0 : i64, tpu.core_type = #tpu.core_type<tc>, window_params = [{pipeline_mode = #tpu.pipeline_mode<synchronous>, transform_indices = @transform_0, window_bounds = array<i64: 9, 276>}, {pipeline_mode = #tpu.pipeline_mode<synchronous>, transform_indices = @transform_1, window_bounds = array<i64: 9, 8, 8>}, {pipeline_mode = #tpu.pipeline_mode<synchronous>, transform_indices = @transform_2, window_bounds = array<i64: 8, 2>}, {pipeline_mode = #tpu.pipeline_mode<synchronous>, transform_indices = @transform_3, window_bounds = array<i64: 8, 256>}]} {
    %c0 = arith.constant 0 : index
    %c0_0 = arith.constant 0 : index
    %0 = vector.load %arg1[%c0, %c0_0] : memref<9x276xf32, #tpu.memory_space<vmem>>, vector<9x276xf32>
    %c0_1 = arith.constant 0 : index
    %c0_2 = arith.constant 0 : index
    %c0_3 = arith.constant 0 : index
    %1 = vector.load %arg2[%c0_1, %c0_2, %c0_3] : memref<9x8x8xf32, #tpu.memory_space<vmem>>, vector<9x8x8xf32>
    %2 = vector.extract_strided_slice %0 {offsets = [8, 10], sizes = [1, 256], strides = [1, 1]} : vector<9x276xf32> to vector<1x256xf32>
    %cst = arith.constant 0.000000e+00 : f32
    %3 = vector.broadcast %cst : f32 to vector<8x256xf32>
    %4 = vector.extract_strided_slice %0 {offsets = [0, 0], sizes = [8, 256], strides = [1, 1]} : vector<9x276xf32> to vector<8x256xf32>
    %5 = vector.extract_strided_slice %1 {offsets = [0, 0, 0], sizes = [1, 8, 8], strides = [1, 1, 1]} : vector<9x8x8xf32> to vector<1x8x8xf32>
    %6 = vector.shape_cast %5 : vector<1x8x8xf32> to vector<8x8xf32>
    %cst_4 = arith.constant dense<0.000000e+00> : vector<8x256xf32>
    %7 = tpu.matmul %6, %4, %cst_4 {dimension_numbers = #tpu.dot_dimension_numbers<[1], [0], [0], [1], [0, 0, 1, 1], [], []>} : vector<8x8xf32>, vector<8x256xf32>, vector<8x256xf32> -> vector<8x256xf32>
    %8 = arith.addf %3, %7 : vector<8x256xf32>
    %9 = vector.extract_strided_slice %0 {offsets = [0, 1], sizes = [8, 256], strides = [1, 1]} : vector<9x276xf32> to vector<8x256xf32>
    %10 = vector.extract_strided_slice %1 {offsets = [1, 0, 0], sizes = [1, 8, 8], strides = [1, 1, 1]} : vector<9x8x8xf32> to vector<1x8x8xf32>
    %11 = vector.shape_cast %10 : vector<1x8x8xf32> to vector<8x8xf32>
    %cst_5 = arith.constant dense<0.000000e+00> : vector<8x256xf32>
    %12 = tpu.matmul %11, %9, %cst_5 {dimension_numbers = #tpu.dot_dimension_numbers<[1], [0], [0], [1], [0, 0, 1, 1], [], []>} : vector<8x8xf32>, vector<8x256xf32>, vector<8x256xf32> -> vector<8x256xf32>
    %13 = arith.addf %8, %12 : vector<8x256xf32>
    %14 = vector.extract_strided_slice %0 {offsets = [0, 2], sizes = [8, 256], strides = [1, 1]} : vector<9x276xf32> to vector<8x256xf32>
    %15 = vector.extract_strided_slice %1 {offsets = [2, 0, 0], sizes = [1, 8, 8], strides = [1, 1, 1]} : vector<9x8x8xf32> to vector<1x8x8xf32>
    %16 = vector.shape_cast %15 : vector<1x8x8xf32> to vector<8x8xf32>
    %cst_6 = arith.constant dense<0.000000e+00> : vector<8x256xf32>
    %17 = tpu.matmul %16, %14, %cst_6 {dimension_numbers = #tpu.dot_dimension_numbers<[1], [0], [0], [1], [0, 0, 1, 1], [], []>} : vector<8x8xf32>, vector<8x256xf32>, vector<8x256xf32> -> vector<8x256xf32>
    %18 = arith.addf %13, %17 : vector<8x256xf32>
    %19 = vector.extract_strided_slice %0 {offsets = [0, 9], sizes = [8, 256], strides = [1, 1]} : vector<9x276xf32> to vector<8x256xf32>
    %20 = vector.extract_strided_slice %1 {offsets = [3, 0, 0], sizes = [1, 8, 8], strides = [1, 1, 1]} : vector<9x8x8xf32> to vector<1x8x8xf32>
    %21 = vector.shape_cast %20 : vector<1x8x8xf32> to vector<8x8xf32>
    %cst_7 = arith.constant dense<0.000000e+00> : vector<8x256xf32>
    %22 = tpu.matmul %21, %19, %cst_7 {dimension_numbers = #tpu.dot_dimension_numbers<[1], [0], [0], [1], [0, 0, 1, 1], [], []>} : vector<8x8xf32>, vector<8x256xf32>, vector<8x256xf32> -> vector<8x256xf32>
    %23 = arith.addf %18, %22 : vector<8x256xf32>
    %24 = vector.extract_strided_slice %0 {offsets = [0, 10], sizes = [8, 256], strides = [1, 1]} : vector<9x276xf32> to vector<8x256xf32>
    %25 = vector.extract_strided_slice %1 {offsets = [4, 0, 0], sizes = [1, 8, 8], strides = [1, 1, 1]} : vector<9x8x8xf32> to vector<1x8x8xf32>
    %26 = vector.shape_cast %25 : vector<1x8x8xf32> to vector<8x8xf32>
    %cst_8 = arith.constant dense<0.000000e+00> : vector<8x256xf32>
    %27 = tpu.matmul %26, %24, %cst_8 {dimension_numbers = #tpu.dot_dimension_numbers<[1], [0], [0], [1], [0, 0, 1, 1], [], []>} : vector<8x8xf32>, vector<8x256xf32>, vector<8x256xf32> -> vector<8x256xf32>
    %28 = arith.addf %23, %27 : vector<8x256xf32>
    %29 = vector.extract_strided_slice %0 {offsets = [0, 11], sizes = [8, 256], strides = [1, 1]} : vector<9x276xf32> to vector<8x256xf32>
    %30 = vector.extract_strided_slice %1 {offsets = [5, 0, 0], sizes = [1, 8, 8], strides = [1, 1, 1]} : vector<9x8x8xf32> to vector<1x8x8xf32>
    %31 = vector.shape_cast %30 : vector<1x8x8xf32> to vector<8x8xf32>
    %cst_9 = arith.constant dense<0.000000e+00> : vector<8x256xf32>
    %32 = tpu.matmul %31, %29, %cst_9 {dimension_numbers = #tpu.dot_dimension_numbers<[1], [0], [0], [1], [0, 0, 1, 1], [], []>} : vector<8x8xf32>, vector<8x256xf32>, vector<8x256xf32> -> vector<8x256xf32>
    %33 = arith.addf %28, %32 : vector<8x256xf32>
    %34 = vector.extract_strided_slice %0 {offsets = [0, 18], sizes = [8, 256], strides = [1, 1]} : vector<9x276xf32> to vector<8x256xf32>
    %35 = vector.extract_strided_slice %1 {offsets = [6, 0, 0], sizes = [1, 8, 8], strides = [1, 1, 1]} : vector<9x8x8xf32> to vector<1x8x8xf32>
    %36 = vector.shape_cast %35 : vector<1x8x8xf32> to vector<8x8xf32>
    %cst_10 = arith.constant dense<0.000000e+00> : vector<8x256xf32>
    %37 = tpu.matmul %36, %34, %cst_10 {dimension_numbers = #tpu.dot_dimension_numbers<[1], [0], [0], [1], [0, 0, 1, 1], [], []>} : vector<8x8xf32>, vector<8x256xf32>, vector<8x256xf32> -> vector<8x256xf32>
    %38 = arith.addf %33, %37 : vector<8x256xf32>
    %39 = vector.extract_strided_slice %0 {offsets = [0, 19], sizes = [8, 256], strides = [1, 1]} : vector<9x276xf32> to vector<8x256xf32>
    %40 = vector.extract_strided_slice %1 {offsets = [7, 0, 0], sizes = [1, 8, 8], strides = [1, 1, 1]} : vector<9x8x8xf32> to vector<1x8x8xf32>
    %41 = vector.shape_cast %40 : vector<1x8x8xf32> to vector<8x8xf32>
    %cst_11 = arith.constant dense<0.000000e+00> : vector<8x256xf32>
    %42 = tpu.matmul %41, %39, %cst_11 {dimension_numbers = #tpu.dot_dimension_numbers<[1], [0], [0], [1], [0, 0, 1, 1], [], []>} : vector<8x8xf32>, vector<8x256xf32>, vector<8x256xf32> -> vector<8x256xf32>
    %43 = arith.addf %38, %42 : vector<8x256xf32>
    %44 = vector.extract_strided_slice %0 {offsets = [0, 20], sizes = [8, 256], strides = [1, 1]} : vector<9x276xf32> to vector<8x256xf32>
    %45 = vector.extract_strided_slice %1 {offsets = [8, 0, 0], sizes = [1, 8, 8], strides = [1, 1, 1]} : vector<9x8x8xf32> to vector<1x8x8xf32>
    %46 = vector.shape_cast %45 : vector<1x8x8xf32> to vector<8x8xf32>
    %cst_12 = arith.constant dense<0.000000e+00> : vector<8x256xf32>
    %47 = tpu.matmul %46, %44, %cst_12 {dimension_numbers = #tpu.dot_dimension_numbers<[1], [0], [0], [1], [0, 0, 1, 1], [], []>} : vector<8x8xf32>, vector<8x256xf32>, vector<8x256xf32> -> vector<8x256xf32>
    %48 = arith.addf %43, %47 : vector<8x256xf32>
    %49 = vector.extract_strided_slice %0 {offsets = [0, 10], sizes = [8, 256], strides = [1, 1]} : vector<9x276xf32> to vector<8x256xf32>
    %c0_13 = arith.constant 0 : index
    %c0_14 = arith.constant 0 : index
    %50 = vector.load %arg3[%c0_13, %c0_14] : memref<8x2xf32, #tpu.memory_space<vmem>>, vector<8x1xf32>
    %c0_15 = arith.constant 0 : index
    %c1 = arith.constant 1 : index
    %51 = vector.load %arg3[%c0_15, %c1] : memref<8x2xf32, #tpu.memory_space<vmem>>, vector<8x1xf32>
    %52 = vector.broadcast %2 : vector<1x256xf32> to vector<8x256xf32>
    %53 = arith.mulf %48, %52 : vector<8x256xf32>
    %cst_16 = arith.constant dense<0.000000e+00> : vector<8xf32>
    %54 = vector.multi_reduction <add>, %53, %cst_16 [1] : vector<8x256xf32> to vector<8xf32>
    %55 = vector.shape_cast %54 : vector<8xf32> to vector<8x1xf32>
    %56 = arith.mulf %53, %48 : vector<8x256xf32>
    %cst_17 = arith.constant dense<0.000000e+00> : vector<8xf32>
    %57 = vector.multi_reduction <add>, %56, %cst_17 [1] : vector<8x256xf32> to vector<8xf32>
    %58 = vector.shape_cast %57 : vector<8xf32> to vector<8x1xf32>
    %cst_18 = arith.constant 0.0119047621 : f32
    %59 = vector.broadcast %cst_18 : f32 to vector<8x1xf32>
    %60 = arith.mulf %55, %59 : vector<8x1xf32>
    %cst_19 = arith.constant 0.0119047621 : f32
    %61 = vector.broadcast %cst_19 : f32 to vector<8x1xf32>
    %62 = arith.mulf %58, %61 : vector<8x1xf32>
    %63 = arith.mulf %60, %60 : vector<8x1xf32>
    %64 = arith.subf %62, %63 : vector<8x1xf32>
    %cst_20 = arith.constant 0.000000e+00 : f32
    %65 = vector.broadcast %cst_20 : f32 to vector<8x1xf32>
    %66 = arith.maximumf %64, %65 : vector<8x1xf32>
    %cst_21 = arith.constant 9.99999974E-6 : f32
    %67 = vector.broadcast %cst_21 : f32 to vector<8x1xf32>
    %68 = arith.addf %66, %67 : vector<8x1xf32>
    %69 = math.rsqrt %68 : vector<8x1xf32>
    %70 = arith.mulf %50, %69 : vector<8x1xf32>
    %71 = arith.mulf %60, %70 : vector<8x1xf32>
    %72 = arith.subf %51, %71 : vector<8x1xf32>
    %73 = vector.broadcast %70 : vector<8x1xf32> to vector<8x256xf32>
    %74 = arith.mulf %48, %73 : vector<8x256xf32>
    %75 = vector.broadcast %72 : vector<8x1xf32> to vector<8x256xf32>
    %76 = arith.addf %74, %75 : vector<8x256xf32>
    %cst_22 = arith.constant 0.000000e+00 : f32
    %77 = vector.broadcast %cst_22 : f32 to vector<8x256xf32>
    %78 = arith.maximumf %76, %77 : vector<8x256xf32>
    %79 = vector.broadcast %2 : vector<1x256xf32> to vector<8x256xf32>
    %80 = arith.mulf %78, %79 : vector<8x256xf32>
    %cst_23 = arith.constant dense<0.000000e+00> : vector<8xf32>
    %81 = vector.multi_reduction <add>, %80, %cst_23 [1] : vector<8x256xf32> to vector<8xf32>
    %82 = vector.shape_cast %81 : vector<8xf32> to vector<8x1xf32>
    %83 = arith.mulf %80, %78 : vector<8x256xf32>
    %cst_24 = arith.constant dense<0.000000e+00> : vector<8xf32>
    %84 = vector.multi_reduction <add>, %83, %cst_24 [1] : vector<8x256xf32> to vector<8xf32>
    %85 = vector.shape_cast %84 : vector<8xf32> to vector<8x1xf32>
    %cst_25 = arith.constant 0.0119047621 : f32
    %86 = vector.broadcast %cst_25 : f32 to vector<8x1xf32>
    %87 = arith.mulf %82, %86 : vector<8x1xf32>
    %cst_26 = arith.constant 0.0119047621 : f32
    %88 = vector.broadcast %cst_26 : f32 to vector<8x1xf32>
    %89 = arith.mulf %85, %88 : vector<8x1xf32>
    %90 = arith.mulf %87, %87 : vector<8x1xf32>
    %91 = arith.subf %89, %90 : vector<8x1xf32>
    %cst_27 = arith.constant 0.000000e+00 : f32
    %92 = vector.broadcast %cst_27 : f32 to vector<8x1xf32>
    %93 = arith.maximumf %91, %92 : vector<8x1xf32>
    %cst_28 = arith.constant 9.99999974E-6 : f32
    %94 = vector.broadcast %cst_28 : f32 to vector<8x1xf32>
    %95 = arith.addf %93, %94 : vector<8x1xf32>
    %96 = math.rsqrt %95 : vector<8x1xf32>
    %97 = arith.mulf %50, %96 : vector<8x1xf32>
    %98 = arith.mulf %87, %97 : vector<8x1xf32>
    %99 = arith.subf %51, %98 : vector<8x1xf32>
    %100 = vector.broadcast %97 : vector<8x1xf32> to vector<8x256xf32>
    %101 = arith.mulf %78, %100 : vector<8x256xf32>
    %102 = vector.broadcast %99 : vector<8x1xf32> to vector<8x256xf32>
    %103 = arith.addf %101, %102 : vector<8x256xf32>
    %104 = arith.addf %103, %49 : vector<8x256xf32>
    %cst_29 = arith.constant 0.000000e+00 : f32
    %105 = vector.broadcast %cst_29 : f32 to vector<8x256xf32>
    %106 = arith.maximumf %104, %105 : vector<8x256xf32>
    %c0_30 = arith.constant 0 : index
    %c0_31 = arith.constant 0 : index
    %107 = vector.load %arg4[%c0_30, %c0_31] : memref<8x256xf32, #tpu.memory_space<vmem>>, vector<8x256xf32>
    tpu.vector_store %arg4[%c0_30, %c0_31], %106 {strides = array<i32>} : memref<8x256xf32, #tpu.memory_space<vmem>>, vector<8x256xf32>,
    return
  }
  func.func @transform_0(%arg0: i32) -> (i32, i32) {
    %c0_i32 = arith.constant 0 : i32
    %c0_i32_0 = arith.constant 0 : i32
    %c0_i32_1 = arith.constant 0 : i32
    return %c0_i32, %c0_i32_0 : i32, i32
  }
  func.func @transform_1(%arg0: i32) -> (i32, i32, i32) {
    %c0_i32 = arith.constant 0 : i32
    %c0_i32_0 = arith.constant 0 : i32
    %c0_i32_1 = arith.constant 0 : i32
    %c0_i32_2 = arith.constant 0 : i32
    return %c0_i32, %c0_i32_0, %c0_i32_1 : i32, i32, i32
  }
  func.func @transform_2(%arg0: i32) -> (i32, i32) {
    %c0_i32 = arith.constant 0 : i32
    %c0_i32_0 = arith.constant 0 : i32
    %c0_i32_1 = arith.constant 0 : i32
    return %c0_i32, %c0_i32_0 : i32, i32
  }
  func.func @transform_3(%arg0: i32) -> (i32, i32) {
    %c0_i32 = arith.constant 0 : i32
    %c0_i32_0 = arith.constant 0 : i32
    %c0_i32_1 = arith.constant 0 : i32
    return %c0_i32, %c0_i32_0 : i32, i32
  }
}

</mosaic_0001>

<llo_original>
// kernel: tpu_custom_call.1
$region0: #{tpu_custom_call.1}
  #allocation0 [shape = 'u32[]', space=smem, size = 0x4, offset = 0x4, fixed_abs, tag = 'smem constant byte address 0x4 - core index']
  #allocation1 [shape = 'u32[144,128]{1,0:T(1,128)}', space=vmem, size = 0x12000, scoped, tag = 'internal scratch']
  %s0 = inlined_call_operand.vmem [shape: f32[9,276], index: 0, kind: input, shape index: {}]
  %s1 = inlined_call_operand.vmem [shape: f32[9,8,8], index: 1, kind: input, shape index: {}]
  %s2 = inlined_call_operand.vmem [shape: f32[8,2], index: 2, kind: input, shape index: {}]
  %s3 = inlined_call_operand.hbm [shape: f32[8,256], index: 3, kind: output, shape index: {}]
  %s4 = sld [smem:[#allocation0]]
  $region22: #{tpu_custom_call.1} parent=0
    _
  %s6 = ssub.s32 1, %s4
  %s7 = scalar_select 0, %s6, %s4
  $region1: #{tpu_custom_call.1} parent=0
    #allocation2 [shape = 'u8[8192]{0}', space=vmem, size = 0x2000, scoped, tag = 'output window, operand 0, single buffered']
    #allocation3 [shape = 's32[1]{0}', space=sflag, size = 0x4, scoped, tag = 'scoped memory for tpu_custom_call.1']
    %8 = vsyncpa [#allocation3], 0
    // Predicated region
    $region2: #{tpu_custom_call.1} parent=1 // pred_check
      _
    $region3: #{tpu_custom_call.1} parent=1 // pred_check_branch
      %10 = sbr.rel (0) target = $region5
    $region4: #{tpu_custom_call.1} parent=1 // pred_region
      _
    $region5: #{tpu_custom_call.1} parent=1 // pred_fallthru
      _
    // Predicated region
    $region6: #{tpu_custom_call.1} parent=1 // pred_check
      _
    $region7: #{tpu_custom_call.1} parent=1 // pred_check_branch
      %12 = sbr.rel (0) target = $region9
    $region8: #{tpu_custom_call.1} parent=1 // pred_region
      _
    $region9: #{tpu_custom_call.1} parent=1 // pred_fallthru
      _
    // Predicated region
    $region10: #{tpu_custom_call.1} parent=1 // pred_check
      _
    $region11: #{tpu_custom_call.1} parent=1 // pred_check_branch
      %14 = sbr.rel (0) target = $region13
    $region12: #{tpu_custom_call.1} parent=1 // pred_region
      _
    $region13: #{tpu_custom_call.1} parent=1 // pred_fallthru
      _
    %v15 = vld [vmem:[%s0] sm:$0xff]
    %v16 = vld [vmem:[%s0 + $0x8] sm:$0xff]
    %v17 = vld [vmem:[%s0 + $0x10] sm:$0xff]
    %v18 = vld [vmem:[%s0 + $0x18] sm:$0x1]
    %v19 = vld [vmem:[%s0 + $0x20] sm:$0x1]
    %v20 = vld [vmem:[%s0 + $0x28] sm:$0x1]
    %v21 = vld [vmem:[%s1] sm:$0xff]
    %v22 = vld [vmem:[%s1 + $0x8] sm:$0xff]
    %v23 = vld [vmem:[%s1 + $0x10] sm:$0xff]
    %v24 = vld [vmem:[%s1 + $0x18] sm:$0xff]
    %v25 = vld [vmem:[%s1 + $0x20] sm:$0xff]
    %v26 = vld [vmem:[%s1 + $0x28] sm:$0xff]
    %v27 = vld [vmem:[%s1 + $0x30] sm:$0xff]
    %v28 = vld [vmem:[%s1 + $0x38] sm:$0xff]
    %v29 = vld [vmem:[%s1 + $0x40] sm:$0xff]
    %33 = vrot.lane.b32.xlu0 %v15, 127
    %v34 = vpop.permute.xlu0 %33
    %35 = vrot.lane.b32.xlu0 %v16, 127
    %v36 = vpop.permute.xlu0 %35
    %37 = vrot.lane.b32.xlu0 %v17, 127
    %v38 = vpop.permute.xlu0 %37
    %vm39 = vcmask 1039360
    %v40 = vsel %vm39, %v34, %v36
    %v41 = vsel %vm39, %v36, %v38
    %vm44 = vcmask 64512
    %v46 = vsel %vm44, %v22, 0
    %48 = vmatprep.subr.mxu0 0.0
    %49 = vmatpush1.msra.mxu0 0.0
    %50 = vmatprep.subr.mxu0 0.0
    %51 = vmatpush1.msra.mxu0 0.0
    %52 = vmatprep.subr.mxu0 0.0
    %53 = vmatpush1.msra.mxu0 0.0
    %54 = vmatprep.subr.mxu0 0.0
    %55 = vmatpush1.msra.mxu0 0.0
    %56 = vmatprep.subr.mxu0 0.0
    %57 = vmatpush1.msra.mxu0 0.0
    %58 = vmatprep.subr.mxu0 0.0
    %59 = vmatpush1.msra.mxu0 0.0
    %60 = vmatprep.subr.mxu0 0.0
    %61 = vmatpush1.msra.mxu0 0.0
    %62 = vmatprep.subr.mxu0 0.0
    %63 = vmatpush1.msra.mxu0 0.0
    %64 = vmatprep.subr.mxu0 0.0
    %65 = vmatpush1.msra.mxu0 0.0
    %66 = vmatprep.subr.mxu0 0.0
    %67 = vmatpush1.msra.mxu0 0.0
    %68 = vmatprep.subr.mxu0 0.0
    %69 = vmatpush1.msra.mxu0 0.0
    %70 = vmatprep.subr.mxu0 0.0
    %71 = vmatpush1.msra.mxu0 0.0
    %72 = vmatprep.subr.mxu0 0.0
    %73 = vmatpush1.msra.mxu0 0.0
    %74 = vmatprep.subr.mxu0 0.0
    %75 = vmatpush1.msra.mxu0 0.0
    %76 = vmatprep.subr.mxu0 0.0
    %77 = vmatpush1.msra.mxu0 0.0
    %78 = vmatprep.subr.mxu0 %v41
    %79 = vmatpush1.msra.mxu0 %v40
    %80 = vmatprep.subr.mxu0 0.0
    %81 = vmatpush2.msra.mxu0 0.0
    %82 = vmatprep.subr.mxu0 0.0
    %83 = vmatpush2.msra.mxu0 0.0
    %84 = vmatprep.subr.mxu0 0.0
    %85 = vmatpush2.msra.mxu0 0.0
    %86 = vmatprep.subr.mxu0 0.0
    %87 = vmatpush2.msra.mxu0 0.0
    %88 = vmatprep.subr.mxu0 0.0
    %89 = vmatpush2.msra.mxu0 0.0
    %90 = vmatprep.subr.mxu0 0.0
    %91 = vmatpush2.msra.mxu0 0.0
    %92 = vmatprep.subr.mxu0 0.0
    %93 = vmatpush2.msra.mxu0 0.0
    %94 = vmatprep.subr.mxu0 0.0
    %95 = vmatpush2.msra.mxu0 0.0
    %96 = vmatprep.subr.mxu0 0.0
    %97 = vmatpush2.msra.mxu0 0.0
    %98 = vmatprep.subr.mxu0 0.0
    %99 = vmatpush2.msra.mxu0 0.0
    %100 = vmatprep.subr.mxu0 0.0
    %101 = vmatpush2.msra.mxu0 0.0
    %102 = vmatprep.subr.mxu0 0.0
    %103 = vmatpush2.msra.mxu0 0.0
    %104 = vmatprep.subr.mxu0 0.0
    %105 = vmatpush2.msra.mxu0 0.0
    %106 = vmatprep.subr.mxu0 0.0
    %107 = vmatpush2.msra.mxu0 0.0
    %108 = vmatprep.subr.mxu0 0.0
    %109 = vmatpush2.msra.mxu0 0.0
    %110 = vmatprep.subr.mxu0 0.0
    %111 = vmatpush2.msra.mxu0 0.0
    %112 = vmatprep.mubr.f32.mxu0 0.0
    %113 = vmatmul.mubr.f32.gmra.mxu0 %v46
    %v114 = vpop.f32.mrf.mxu0
    %v115 = vadd.f32 0.0, %v114
    %v116 = vpop.f32.mrf.mxu0
    %v117 = vadd.f32 0.0, %v116
    %118 = vdwg.mxu0
    %v120 = vsel %vm44, %v21, 0
    %122 = vmatprep.subr.mxu0 0.0
    %123 = vmatpush1.msra.mxu0 0.0
    %124 = vmatprep.subr.mxu0 0.0
    %125 = vmatpush1.msra.mxu0 0.0
    %126 = vmatprep.subr.mxu0 0.0
    %127 = vmatpush1.msra.mxu0 0.0
    %128 = vmatprep.subr.mxu0 0.0
    %129 = vmatpush1.msra.mxu0 0.0
    %130 = vmatprep.subr.mxu0 0.0
    %131 = vmatpush1.msra.mxu0 0.0
    %132 = vmatprep.subr.mxu0 0.0
    %133 = vmatpush1.msra.mxu0 0.0
    %134 = vmatprep.subr.mxu0 0.0
    %135 = vmatpush1.msra.mxu0 0.0
    %136 = vmatprep.subr.mxu0 0.0
    %137 = vmatpush1.msra.mxu0 0.0
    %138 = vmatprep.subr.mxu0 0.0
    %139 = vmatpush1.msra.mxu0 0.0
    %140 = vmatprep.subr.mxu0 0.0
    %141 = vmatpush1.msra.mxu0 0.0
    %142 = vmatprep.subr.mxu0 0.0
    %143 = vmatpush1.msra.mxu0 0.0
    %144 = vmatprep.subr.mxu0 0.0
    %145 = vmatpush1.msra.mxu0 0.0
    %146 = vmatprep.subr.mxu0 0.0
    %147 = vmatpush1.msra.mxu0 0.0
    %148 = vmatprep.subr.mxu0 0.0
    %149 = vmatpush1.msra.mxu0 0.0
    %150 = vmatprep.subr.mxu0 0.0
    %151 = vmatpush1.msra.mxu0 0.0
    %152 = vmatprep.subr.mxu0 %v16
    %153 = vmatpush1.msra.mxu0 %v15
    %154 = vmatprep.subr.mxu0 0.0
    %155 = vmatpush2.msra.mxu0 0.0
    %156 = vmatprep.subr.mxu0 0.0
    %157 = vmatpush2.msra.mxu0 0.0
    %158 = vmatprep.subr.mxu0 0.0
    %159 = vmatpush2.msra.mxu0 0.0
    %160 = vmatprep.subr.mxu0 0.0
    %161 = vmatpush2.msra.mxu0 0.0
    %162 = vmatprep.subr.mxu0 0.0
    %163 = vmatpush2.msra.mxu0 0.0
    %164 = vmatprep.subr.mxu0 0.0
    %165 = vmatpush2.msra.mxu0 0.0
    %166 = vmatprep.subr.mxu0 0.0
    %167 = vmatpush2.msra.mxu0 0.0
    %168 = vmatprep.subr.mxu0 0.0
    %169 = vmatpush2.msra.mxu0 0.0
    %170 = vmatprep.subr.mxu0 0.0
    %171 = vmatpush2.msra.mxu0 0.0
    %172 = vmatprep.subr.mxu0 0.0
    %173 = vmatpush2.msra.mxu0 0.0
    %174 = vmatprep.subr.mxu0 0.0
    %175 = vmatpush2.msra.mxu0 0.0
    %176 = vmatprep.subr.mxu0 0.0
    %177 = vmatpush2.msra.mxu0 0.0
    %178 = vmatprep.subr.mxu0 0.0
    %179 = vmatpush2.msra.mxu0 0.0
    %180 = vmatprep.subr.mxu0 0.0
    %181 = vmatpush2.msra.mxu0 0.0
    %182 = vmatprep.subr.mxu0 0.0
    %183 = vmatpush2.msra.mxu0 0.0
    %184 = vmatprep.subr.mxu0 0.0
    %185 = vmatpush2.msra.mxu0 0.0
    %186 = vmatprep.mubr.f32.mxu0 0.0
    %187 = vmatmul.mubr.f32.gmra.mxu0 %v120
    %v188 = vpop.f32.mrf.mxu0
    %v189 = vadd.f32 %v115, %v188
    %v190 = vpop.f32.mrf.mxu0
    %v191 = vadd.f32 %v117, %v190
    %192 = vdwg.mxu0
    %193 = vrot.lane.b32.xlu0 %v15, 126
    %v194 = vpop.permute.xlu0 %193
    %195 = vrot.lane.b32.xlu0 %v16, 126
    %v196 = vpop.permute.xlu0 %195
    %197 = vrot.lane.b32.xlu0 %v17, 126
    %v198 = vpop.permute.xlu0 %197
    %vm199 = vcmask 1031168
    %v200 = vsel %vm199, %v194, %v196
    %v201 = vsel %vm199, %v196, %v198
    %v205 = vsel %vm44, %v23, 0
    %207 = vmatprep.subr.mxu0 0.0
    %208 = vmatpush1.msra.mxu0 0.0
    %209 = vmatprep.subr.mxu0 0.0
    %210 = vmatpush1.msra.mxu0 0.0
    %211 = vmatprep.subr.mxu0 0.0
    %212 = vmatpush1.msra.mxu0 0.0
    %213 = vmatprep.subr.mxu0 0.0
    %214 = vmatpush1.msra.mxu0 0.0
    %215 = vmatprep.subr.mxu0 0.0
    %216 = vmatpush1.msra.mxu0 0.0
    %217 = vmatprep.subr.mxu0 0.0
    %218 = vmatpush1.msra.mxu0 0.0
    %219 = vmatprep.subr.mxu0 0.0
    %220 = vmatpush1.msra.mxu0 0.0
    %221 = vmatprep.subr.mxu0 0.0
    %222 = vmatpush1.msra.mxu0 0.0
    %223 = vmatprep.subr.mxu0 0.0
    %224 = vmatpush1.msra.mxu0 0.0
    %225 = vmatprep.subr.mxu0 0.0
    %226 = vmatpush1.msra.mxu0 0.0
    %227 = vmatprep.subr.mxu0 0.0
    %228 = vmatpush1.msra.mxu0 0.0
    %229 = vmatprep.subr.mxu0 0.0
    %230 = vmatpush1.msra.mxu0 0.0
    %231 = vmatprep.subr.mxu0 0.0
    %232 = vmatpush1.msra.mxu0 0.0
    %233 = vmatprep.subr.mxu0 0.0
    %234 = vmatpush1.msra.mxu0 0.0
    %235 = vmatprep.subr.mxu0 0.0
    %236 = vmatpush1.msra.mxu0 0.0
    %237 = vmatprep.subr.mxu0 %v201
    %238 = vmatpush1.msra.mxu0 %v200
    %239 = vmatprep.subr.mxu0 0.0
    %240 = vmatpush2.msra.mxu0 0.0
    %241 = vmatprep.subr.mxu0 0.0
    %242 = vmatpush2.msra.mxu0 0.0
    %243 = vmatprep.subr.mxu0 0.0
    %244 = vmatpush2.msra.mxu0 0.0
    %245 = vmatprep.subr.mxu0 0.0
    %246 = vmatpush2.msra.mxu0 0.0
    %247 = vmatprep.subr.mxu0 0.0
    %248 = vmatpush2.msra.mxu0 0.0
    %249 = vmatprep.subr.mxu0 0.0
    %250 = vmatpush2.msra.mxu0 0.0
    %251 = vmatprep.subr.mxu0 0.0
    %252 = vmatpush2.msra.mxu0 0.0
    %253 = vmatprep.subr.mxu0 0.0
    %254 = vmatpush2.msra.mxu0 0.0
    %255 = vmatprep.subr.mxu0 0.0
    %256 = vmatpush2.msra.mxu0 0.0
    %257 = vmatprep.subr.mxu0 0.0
    %258 = vmatpush2.msra.mxu0 0.0
    %259 = vmatprep.subr.mxu0 0.0
    %260 = vmatpush2.msra.mxu0 0.0
    %261 = vmatprep.subr.mxu0 0.0
    %262 = vmatpush2.msra.mxu0 0.0
    %263 = vmatprep.subr.mxu0 0.0
    %264 = vmatpush2.msra.mxu0 0.0
    %265 = vmatprep.subr.mxu0 0.0
    %266 = vmatpush2.msra.mxu0 0.0
    %267 = vmatprep.subr.mxu0 0.0
    %268 = vmatpush2.msra.mxu0 0.0
    %269 = vmatprep.subr.mxu0 0.0
    %270 = vmatpush2.msra.mxu0 0.0
    %271 = vmatprep.mubr.f32.mxu0 0.0
    %272 = vmatmul.mubr.f32.gmra.mxu0 %v205
    %v273 = vpop.f32.mrf.mxu0
    %v274 = vadd.f32 0.0, %v273
    %v275 = vpop.f32.mrf.mxu0
    %v276 = vadd.f32 0.0, %v275
    %277 = vdwg.mxu0
    %v278 = vadd.f32 %v189, %v274
    %v279 = vadd.f32 %v191, %v276
    %280 = vrot.lane.b32.xlu0 %v15, 119
    %v281 = vpop.permute.xlu0 %280
    %282 = vrot.lane.b32.xlu0 %v16, 119
    %v283 = vpop.permute.xlu0 %282
    %284 = vrot.lane.b32.xlu0 %v17, 119
    %v285 = vpop.permute.xlu0 %284
    %vm286 = vcmask 973824
    %v287 = vsel %vm286, %v281, %v283
    %v288 = vsel %vm286, %v283, %v285
    %v292 = vsel %vm44, %v24, 0
    %294 = vmatprep.subr.mxu0 0.0
    %295 = vmatpush1.msra.mxu0 0.0
    %296 = vmatprep.subr.mxu0 0.0
    %297 = vmatpush1.msra.mxu0 0.0
    %298 = vmatprep.subr.mxu0 0.0
    %299 = vmatpush1.msra.mxu0 0.0
    %300 = vmatprep.subr.mxu0 0.0
    %301 = vmatpush1.msra.mxu0 0.0
    %302 = vmatprep.subr.mxu0 0.0
    %303 = vmatpush1.msra.mxu0 0.0
    %304 = vmatprep.subr.mxu0 0.0
    %305 = vmatpush1.msra.mxu0 0.0
    %306 = vmatprep.subr.mxu0 0.0
    %307 = vmatpush1.msra.mxu0 0.0
    %308 = vmatprep.subr.mxu0 0.0
    %309 = vmatpush1.msra.mxu0 0.0
    %310 = vmatprep.subr.mxu0 0.0
    %311 = vmatpush1.msra.mxu0 0.0
    %312 = vmatprep.subr.mxu0 0.0
    %313 = vmatpush1.msra.mxu0 0.0
    %314 = vmatprep.subr.mxu0 0.0
    %315 = vmatpush1.msra.mxu0 0.0
    %316 = vmatprep.subr.mxu0 0.0
    %317 = vmatpush1.msra.mxu0 0.0
    %318 = vmatprep.subr.mxu0 0.0
    %319 = vmatpush1.msra.mxu0 0.0
    %320 = vmatprep.subr.mxu0 0.0
    %321 = vmatpush1.msra.mxu0 0.0
    %322 = vmatprep.subr.mxu0 0.0
    %323 = vmatpush1.msra.mxu0 0.0
    %324 = vmatprep.subr.mxu0 %v288
    %325 = vmatpush1.msra.mxu0 %v287
    %326 = vmatprep.subr.mxu0 0.0
    %327 = vmatpush2.msra.mxu0 0.0
    %328 = vmatprep.subr.mxu0 0.0
    %329 = vmatpush2.msra.mxu0 0.0
    %330 = vmatprep.subr.mxu0 0.0
    %331 = vmatpush2.msra.mxu0 0.0
    %332 = vmatprep.subr.mxu0 0.0
    %333 = vmatpush2.msra.mxu0 0.0
    %334 = vmatprep.subr.mxu0 0.0
    %335 = vmatpush2.msra.mxu0 0.0
    %336 = vmatprep.subr.mxu0 0.0
    %337 = vmatpush2.msra.mxu0 0.0
    %338 = vmatprep.subr.mxu0 0.0
    %339 = vmatpush2.msra.mxu0 0.0
    %340 = vmatprep.subr.mxu0 0.0
    %341 = vmatpush2.msra.mxu0 0.0
    %342 = vmatprep.subr.mxu0 0.0
    %343 = vmatpush2.msra.mxu0 0.0
    %344 = vmatprep.subr.mxu0 0.0
    %345 = vmatpush2.msra.mxu0 0.0
    %346 = vmatprep.subr.mxu0 0.0
    %347 = vmatpush2.msra.mxu0 0.0
    %348 = vmatprep.subr.mxu0 0.0
    %349 = vmatpush2.msra.mxu0 0.0
    %350 = vmatprep.subr.mxu0 0.0
    %351 = vmatpush2.msra.mxu0 0.0
    %352 = vmatprep.subr.mxu0 0.0
    %353 = vmatpush2.msra.mxu0 0.0
    %354 = vmatprep.subr.mxu0 0.0
    %355 = vmatpush2.msra.mxu0 0.0
    %356 = vmatprep.subr.mxu0 0.0
    %357 = vmatpush2.msra.mxu0 0.0
    %358 = vmatprep.mubr.f32.mxu0 0.0
    %359 = vmatmul.mubr.f32.gmra.mxu0 %v292
    %v360 = vpop.f32.mrf.mxu0
    %v361 = vadd.f32 0.0, %v360
    %v362 = vpop.f32.mrf.mxu0
    %v363 = vadd.f32 0.0, %v362
    %364 = vdwg.mxu0
    %v365 = vadd.f32 %v278, %v361
    %v366 = vadd.f32 %v279, %v363
    %367 = vrot.lane.b32.xlu0 %v15, 118
    %v368 = vpop.permute.xlu0 %367
    %369 = vrot.lane.b32.xlu0 %v16, 118
    %v370 = vpop.permute.xlu0 %369
    %371 = vrot.lane.b32.xlu0 %v17, 118
    %v372 = vpop.permute.xlu0 %371
    %vm373 = vcmask 965632
    %v374 = vsel %vm373, %v368, %v370
    %v375 = vsel %vm373, %v370, %v372
    %v379 = vsel %vm44, %v25, 0
    %381 = vmatprep.subr.mxu0 0.0
    %382 = vmatpush1.msra.mxu0 0.0
    %383 = vmatprep.subr.mxu0 0.0
    %384 = vmatpush1.msra.mxu0 0.0
    %385 = vmatprep.subr.mxu0 0.0
    %386 = vmatpush1.msra.mxu0 0.0
    %387 = vmatprep.subr.mxu0 0.0
    %388 = vmatpush1.msra.mxu0 0.0
    %389 = vmatprep.subr.mxu0 0.0
    %390 = vmatpush1.msra.mxu0 0.0
    %391 = vmatprep.subr.mxu0 0.0
    %392 = vmatpush1.msra.mxu0 0.0
    %393 = vmatprep.subr.mxu0 0.0
    %394 = vmatpush1.msra.mxu0 0.0
    %395 = vmatprep.subr.mxu0 0.0
    %396 = vmatpush1.msra.mxu0 0.0
    %397 = vmatprep.subr.mxu0 0.0
    %398 = vmatpush1.msra.mxu0 0.0
    %399 = vmatprep.subr.mxu0 0.0
    %400 = vmatpush1.msra.mxu0 0.0
    %401 = vmatprep.subr.mxu0 0.0
    %402 = vmatpush1.msra.mxu0 0.0
    %403 = vmatprep.subr.mxu0 0.0
    %404 = vmatpush1.msra.mxu0 0.0
    %405 = vmatprep.subr.mxu0 0.0
    %406 = vmatpush1.msra.mxu0 0.0
    %407 = vmatprep.subr.mxu0 0.0
    %408 = vmatpush1.msra.mxu0 0.0
    %409 = vmatprep.subr.mxu0 0.0
    %410 = vmatpush1.msra.mxu0 0.0
    %411 = vmatprep.subr.mxu0 %v375
    %412 = vmatpush1.msra.mxu0 %v374
    %413 = vmatprep.subr.mxu0 0.0
    %414 = vmatpush2.msra.mxu0 0.0
    %415 = vmatprep.subr.mxu0 0.0
    %416 = vmatpush2.msra.mxu0 0.0
    %417 = vmatprep.subr.mxu0 0.0
    %418 = vmatpush2.msra.mxu0 0.0
    %419 = vmatprep.subr.mxu0 0.0
    %420 = vmatpush2.msra.mxu0 0.0
    %421 = vmatprep.subr.mxu0 0.0
    %422 = vmatpush2.msra.mxu0 0.0
    %423 = vmatprep.subr.mxu0 0.0
    %424 = vmatpush2.msra.mxu0 0.0
    %425 = vmatprep.subr.mxu0 0.0
    %426 = vmatpush2.msra.mxu0 0.0
    %427 = vmatprep.subr.mxu0 0.0
    %428 = vmatpush2.msra.mxu0 0.0
    %429 = vmatprep.subr.mxu0 0.0
    %430 = vmatpush2.msra.mxu0 0.0
    %431 = vmatprep.subr.mxu0 0.0
    %432 = vmatpush2.msra.mxu0 0.0
    %433 = vmatprep.subr.mxu0 0.0
    %434 = vmatpush2.msra.mxu0 0.0
    %435 = vmatprep.subr.mxu0 0.0
    %436 = vmatpush2.msra.mxu0 0.0
    %437 = vmatprep.subr.mxu0 0.0
    %438 = vmatpush2.msra.mxu0 0.0
    %439 = vmatprep.subr.mxu0 0.0
    %440 = vmatpush2.msra.mxu0 0.0
    %441 = vmatprep.subr.mxu0 0.0
    %442 = vmatpush2.msra.mxu0 0.0
    %443 = vmatprep.subr.mxu0 0.0
    %444 = vmatpush2.msra.mxu0 0.0
    %445 = vmatprep.mubr.f32.mxu0 0.0
    %446 = vmatmul.mubr.f32.gmra.mxu0 %v379
    %v447 = vpop.f32.mrf.mxu0
    %v448 = vadd.f32 0.0, %v447
    %v449 = vpop.f32.mrf.mxu0
    %v450 = vadd.f32 0.0, %v449
    %451 = vdwg.mxu0
    %v452 = vadd.f32 %v365, %v448
    %v453 = vadd.f32 %v366, %v450
    %454 = vrot.lane.b32.xlu0 %v15, 117
    %v455 = vpop.permute.xlu0 %454
    %456 = vrot.lane.b32.xlu0 %v16, 117
    %v457 = vpop.permute.xlu0 %456
    %458 = vrot.lane.b32.xlu0 %v17, 117
    %v459 = vpop.permute.xlu0 %458
    %vm460 = vcmask 957440
    %v461 = vsel %vm460, %v455, %v457
    %v462 = vsel %vm460, %v457, %v459
    %v466 = vsel %vm44, %v26, 0
    %468 = vmatprep.subr.mxu0 0.0
    %469 = vmatpush1.msra.mxu0 0.0
    %470 = vmatprep.subr.mxu0 0.0
    %471 = vmatpush1.msra.mxu0 0.0
    %472 = vmatprep.subr.mxu0 0.0
    %473 = vmatpush1.msra.mxu0 0.0
    %474 = vmatprep.subr.mxu0 0.0
    %475 = vmatpush1.msra.mxu0 0.0
    %476 = vmatprep.subr.mxu0 0.0
    %477 = vmatpush1.msra.mxu0 0.0
    %478 = vmatprep.subr.mxu0 0.0
    %479 = vmatpush1.msra.mxu0 0.0
    %480 = vmatprep.subr.mxu0 0.0
    %481 = vmatpush1.msra.mxu0 0.0
    %482 = vmatprep.subr.mxu0 0.0
    %483 = vmatpush1.msra.mxu0 0.0
    %484 = vmatprep.subr.mxu0 0.0
    %485 = vmatpush1.msra.mxu0 0.0
    %486 = vmatprep.subr.mxu0 0.0
    %487 = vmatpush1.msra.mxu0 0.0
    %488 = vmatprep.subr.mxu0 0.0
    %489 = vmatpush1.msra.mxu0 0.0
    %490 = vmatprep.subr.mxu0 0.0
    %491 = vmatpush1.msra.mxu0 0.0
    %492 = vmatprep.subr.mxu0 0.0
    %493 = vmatpush1.msra.mxu0 0.0
    %494 = vmatprep.subr.mxu0 0.0
    %495 = vmatpush1.msra.mxu0 0.0
    %496 = vmatprep.subr.mxu0 0.0
    %497 = vmatpush1.msra.mxu0 0.0
    %498 = vmatprep.subr.mxu0 %v462
    %499 = vmatpush1.msra.mxu0 %v461
    %500 = vmatprep.subr.mxu0 0.0
    %501 = vmatpush2.msra.mxu0 0.0
    %502 = vmatprep.subr.mxu0 0.0
    %503 = vmatpush2.msra.mxu0 0.0
    %504 = vmatprep.subr.mxu0 0.0
    %505 = vmatpush2.msra.mxu0 0.0
    %506 = vmatprep.subr.mxu0 0.0
    %507 = vmatpush2.msra.mxu0 0.0
    %508 = vmatprep.subr.mxu0 0.0
    %509 = vmatpush2.msra.mxu0 0.0
    %510 = vmatprep.subr.mxu0 0.0
    %511 = vmatpush2.msra.mxu0 0.0
    %512 = vmatprep.subr.mxu0 0.0
    %513 = vmatpush2.msra.mxu0 0.0
    %514 = vmatprep.subr.mxu0 0.0
    %515 = vmatpush2.msra.mxu0 0.0
    %516 = vmatprep.subr.mxu0 0.0
    %517 = vmatpush2.msra.mxu0 0.0
    %518 = vmatprep.subr.mxu0 0.0
    %519 = vmatpush2.msra.mxu0 0.0
    %520 = vmatprep.subr.mxu0 0.0
    %521 = vmatpush2.msra.mxu0 0.0
    %522 = vmatprep.subr.mxu0 0.0
    %523 = vmatpush2.msra.mxu0 0.0
    %524 = vmatprep.subr.mxu0 0.0
    %525 = vmatpush2.msra.mxu0 0.0
    %526 = vmatprep.subr.mxu0 0.0
    %527 = vmatpush2.msra.mxu0 0.0
    %528 = vmatprep.subr.mxu0 0.0
    %529 = vmatpush2.msra.mxu0 0.0
    %530 = vmatprep.subr.mxu0 0.0
    %531 = vmatpush2.msra.mxu0 0.0
    %532 = vmatprep.mubr.f32.mxu0 0.0
    %533 = vmatmul.mubr.f32.gmra.mxu0 %v466
    %v534 = vpop.f32.mrf.mxu0
    %v535 = vadd.f32 0.0, %v534
    %v536 = vpop.f32.mrf.mxu0
    %v537 = vadd.f32 0.0, %v536
    %538 = vdwg.mxu0
    %v539 = vadd.f32 %v452, %v535
    %v540 = vadd.f32 %v453, %v537
    %541 = vrot.lane.b32.xlu0 %v15, 110
    %v542 = vpop.permute.xlu0 %541
    %543 = vrot.lane.b32.xlu0 %v16, 110
    %v544 = vpop.permute.xlu0 %543
    %545 = vrot.lane.b32.xlu0 %v17, 110
    %v546 = vpop.permute.xlu0 %545
    %vm547 = vcmask 900096
    %v548 = vsel %vm547, %v542, %v544
    %v549 = vsel %vm547, %v544, %v546
    %v553 = vsel %vm44, %v27, 0
    %555 = vmatprep.subr.mxu0 0.0
    %556 = vmatpush1.msra.mxu0 0.0
    %557 = vmatprep.subr.mxu0 0.0
    %558 = vmatpush1.msra.mxu0 0.0
    %559 = vmatprep.subr.mxu0 0.0
    %560 = vmatpush1.msra.mxu0 0.0
    %561 = vmatprep.subr.mxu0 0.0
    %562 = vmatpush1.msra.mxu0 0.0
    %563 = vmatprep.subr.mxu0 0.0
    %564 = vmatpush1.msra.mxu0 0.0
    %565 = vmatprep.subr.mxu0 0.0
    %566 = vmatpush1.msra.mxu0 0.0
    %567 = vmatprep.subr.mxu0 0.0
    %568 = vmatpush1.msra.mxu0 0.0
    %569 = vmatprep.subr.mxu0 0.0
    %570 = vmatpush1.msra.mxu0 0.0
    %571 = vmatprep.subr.mxu0 0.0
    %572 = vmatpush1.msra.mxu0 0.0
    %573 = vmatprep.subr.mxu0 0.0
    %574 = vmatpush1.msra.mxu0 0.0
    %575 = vmatprep.subr.mxu0 0.0
    %576 = vmatpush1.msra.mxu0 0.0
    %577 = vmatprep.subr.mxu0 0.0
    %578 = vmatpush1.msra.mxu0 0.0
    %579 = vmatprep.subr.mxu0 0.0
    %580 = vmatpush1.msra.mxu0 0.0
    %581 = vmatprep.subr.mxu0 0.0
    %582 = vmatpush1.msra.mxu0 0.0
    %583 = vmatprep.subr.mxu0 0.0
    %584 = vmatpush1.msra.mxu0 0.0
    %585 = vmatprep.subr.mxu0 %v549
    %586 = vmatpush1.msra.mxu0 %v548
    %587 = vmatprep.subr.mxu0 0.0
    %588 = vmatpush2.msra.mxu0 0.0
    %589 = vmatprep.subr.mxu0 0.0
    %590 = vmatpush2.msra.mxu0 0.0
    %591 = vmatprep.subr.mxu0 0.0
    %592 = vmatpush2.msra.mxu0 0.0
    %593 = vmatprep.subr.mxu0 0.0
    %594 = vmatpush2.msra.mxu0 0.0
    %595 = vmatprep.subr.mxu0 0.0
    %596 = vmatpush2.msra.mxu0 0.0
    %597 = vmatprep.subr.mxu0 0.0
    %598 = vmatpush2.msra.mxu0 0.0
    %599 = vmatprep.subr.mxu0 0.0
    %600 = vmatpush2.msra.mxu0 0.0
    %601 = vmatprep.subr.mxu0 0.0
    %602 = vmatpush2.msra.mxu0 0.0
    %603 = vmatprep.subr.mxu0 0.0
    %604 = vmatpush2.msra.mxu0 0.0
    %605 = vmatprep.subr.mxu0 0.0
    %606 = vmatpush2.msra.mxu0 0.0
    %607 = vmatprep.subr.mxu0 0.0
    %608 = vmatpush2.msra.mxu0 0.0
    %609 = vmatprep.subr.mxu0 0.0
    %610 = vmatpush2.msra.mxu0 0.0
    %611 = vmatprep.subr.mxu0 0.0
    %612 = vmatpush2.msra.mxu0 0.0
    %613 = vmatprep.subr.mxu0 0.0
    %614 = vmatpush2.msra.mxu0 0.0
    %615 = vmatprep.subr.mxu0 0.0
    %616 = vmatpush2.msra.mxu0 0.0
    %617 = vmatprep.subr.mxu0 0.0
    %618 = vmatpush2.msra.mxu0 0.0
    %619 = vmatprep.mubr.f32.mxu0 0.0
    %620 = vmatmul.mubr.f32.gmra.mxu0 %v553
    %v621 = vpop.f32.mrf.mxu0
    %v622 = vadd.f32 0.0, %v621
    %v623 = vpop.f32.mrf.mxu0
    %v624 = vadd.f32 0.0, %v623
    %625 = vdwg.mxu0
    %v626 = vadd.f32 %v539, %v622
    %v627 = vadd.f32 %v540, %v624
    %628 = vrot.lane.b32.xlu0 %v15, 109
    %v629 = vpop.permute.xlu0 %628
    %630 = vrot.lane.b32.xlu0 %v16, 109
    %v631 = vpop.permute.xlu0 %630
    %632 = vrot.lane.b32.xlu0 %v17, 109
    %v633 = vpop.permute.xlu0 %632
    %vm634 = vcmask 891904
    %v635 = vsel %vm634, %v629, %v631
    %v636 = vsel %vm634, %v631, %v633
    %v640 = vsel %vm44, %v28, 0
    %642 = vmatprep.subr.mxu0 0.0
    %643 = vmatpush1.msra.mxu0 0.0
    %644 = vmatprep.subr.mxu0 0.0
    %645 = vmatpush1.msra.mxu0 0.0
    %646 = vmatprep.subr.mxu0 0.0
    %647 = vmatpush1.msra.mxu0 0.0
    %648 = vmatprep.subr.mxu0 0.0
    %649 = vmatpush1.msra.mxu0 0.0
    %650 = vmatprep.subr.mxu0 0.0
    %651 = vmatpush1.msra.mxu0 0.0
    %652 = vmatprep.subr.mxu0 0.0
    %653 = vmatpush1.msra.mxu0 0.0
    %654 = vmatprep.subr.mxu0 0.0
    %655 = vmatpush1.msra.mxu0 0.0
    %656 = vmatprep.subr.mxu0 0.0
    %657 = vmatpush1.msra.mxu0 0.0
    %658 = vmatprep.subr.mxu0 0.0
    %659 = vmatpush1.msra.mxu0 0.0
    %660 = vmatprep.subr.mxu0 0.0
    %661 = vmatpush1.msra.mxu0 0.0
    %662 = vmatprep.subr.mxu0 0.0
    %663 = vmatpush1.msra.mxu0 0.0
    %664 = vmatprep.subr.mxu0 0.0
    %665 = vmatpush1.msra.mxu0 0.0
    %666 = vmatprep.subr.mxu0 0.0
    %667 = vmatpush1.msra.mxu0 0.0
    %668 = vmatprep.subr.mxu0 0.0
    %669 = vmatpush1.msra.mxu0 0.0
    %670 = vmatprep.subr.mxu0 0.0
    %671 = vmatpush1.msra.mxu0 0.0
    %672 = vmatprep.subr.mxu0 %v636
    %673 = vmatpush1.msra.mxu0 %v635
    %674 = vmatprep.subr.mxu0 0.0
    %675 = vmatpush2.msra.mxu0 0.0
    %676 = vmatprep.subr.mxu0 0.0
    %677 = vmatpush2.msra.mxu0 0.0
    %678 = vmatprep.subr.mxu0 0.0
    %679 = vmatpush2.msra.mxu0 0.0
    %680 = vmatprep.subr.mxu0 0.0
    %681 = vmatpush2.msra.mxu0 0.0
    %682 = vmatprep.subr.mxu0 0.0
    %683 = vmatpush2.msra.mxu0 0.0
    %684 = vmatprep.subr.mxu0 0.0
    %685 = vmatpush2.msra.mxu0 0.0
    %686 = vmatprep.subr.mxu0 0.0
    %687 = vmatpush2.msra.mxu0 0.0
    %688 = vmatprep.subr.mxu0 0.0
    %689 = vmatpush2.msra.mxu0 0.0
    %690 = vmatprep.subr.mxu0 0.0
    %691 = vmatpush2.msra.mxu0 0.0
    %692 = vmatprep.subr.mxu0 0.0
    %693 = vmatpush2.msra.mxu0 0.0
    %694 = vmatprep.subr.mxu0 0.0
    %695 = vmatpush2.msra.mxu0 0.0
    %696 = vmatprep.subr.mxu0 0.0
    %697 = vmatpush2.msra.mxu0 0.0
    %698 = vmatprep.subr.mxu0 0.0
    %699 = vmatpush2.msra.mxu0 0.0
    %700 = vmatprep.subr.mxu0 0.0
    %701 = vmatpush2.msra.mxu0 0.0
    %702 = vmatprep.subr.mxu0 0.0
    %703 = vmatpush2.msra.mxu0 0.0
    %704 = vmatprep.subr.mxu0 0.0
    %705 = vmatpush2.msra.mxu0 0.0
    %706 = vmatprep.mubr.f32.mxu0 0.0
    %707 = vmatmul.mubr.f32.gmra.mxu0 %v640
    %v708 = vpop.f32.mrf.mxu0
    %v709 = vadd.f32 0.0, %v708
    %v710 = vpop.f32.mrf.mxu0
    %v711 = vadd.f32 0.0, %v710
    %712 = vdwg.mxu0
    %v713 = vadd.f32 %v626, %v709
    %v714 = vadd.f32 %v627, %v711
    %715 = vrot.lane.b32.xlu0 %v15, 108
    %v716 = vpop.permute.xlu0 %715
    %717 = vrot.lane.b32.xlu0 %v16, 108
    %v718 = vpop.permute.xlu0 %717
    %719 = vrot.lane.b32.xlu0 %v17, 108
    %v720 = vpop.permute.xlu0 %719
    %vm721 = vcmask 883712
    %v722 = vsel %vm721, %v716, %v718
    %v723 = vsel %vm721, %v718, %v720
    %v727 = vsel %vm44, %v29, 0
    %729 = vmatprep.subr.mxu0 0.0
    %730 = vmatpush1.msra.mxu0 0.0
    %731 = vmatprep.subr.mxu0 0.0
    %732 = vmatpush1.msra.mxu0 0.0
    %733 = vmatprep.subr.mxu0 0.0
    %734 = vmatpush1.msra.mxu0 0.0
    %735 = vmatprep.subr.mxu0 0.0
    %736 = vmatpush1.msra.mxu0 0.0
    %737 = vmatprep.subr.mxu0 0.0
    %738 = vmatpush1.msra.mxu0 0.0
    %739 = vmatprep.subr.mxu0 0.0
    %740 = vmatpush1.msra.mxu0 0.0
    %741 = vmatprep.subr.mxu0 0.0
    %742 = vmatpush1.msra.mxu0 0.0
    %743 = vmatprep.subr.mxu0 0.0
    %744 = vmatpush1.msra.mxu0 0.0
    %745 = vmatprep.subr.mxu0 0.0
    %746 = vmatpush1.msra.mxu0 0.0
    %747 = vmatprep.subr.mxu0 0.0
    %748 = vmatpush1.msra.mxu0 0.0
    %749 = vmatprep.subr.mxu0 0.0
    %750 = vmatpush1.msra.mxu0 0.0
    %751 = vmatprep.subr.mxu0 0.0
    %752 = vmatpush1.msra.mxu0 0.0
    %753 = vmatprep.subr.mxu0 0.0
    %754 = vmatpush1.msra.mxu0 0.0
    %755 = vmatprep.subr.mxu0 0.0
    %756 = vmatpush1.msra.mxu0 0.0
    %757 = vmatprep.subr.mxu0 0.0
    %758 = vmatpush1.msra.mxu0 0.0
    %759 = vmatprep.subr.mxu0 %v723
    %760 = vmatpush1.msra.mxu0 %v722
    %761 = vmatprep.subr.mxu0 0.0
    %762 = vmatpush2.msra.mxu0 0.0
    %763 = vmatprep.subr.mxu0 0.0
    %764 = vmatpush2.msra.mxu0 0.0
    %765 = vmatprep.subr.mxu0 0.0
    %766 = vmatpush2.msra.mxu0 0.0
    %767 = vmatprep.subr.mxu0 0.0
    %768 = vmatpush2.msra.mxu0 0.0
    %769 = vmatprep.subr.mxu0 0.0
    %770 = vmatpush2.msra.mxu0 0.0
    %771 = vmatprep.subr.mxu0 0.0
    %772 = vmatpush2.msra.mxu0 0.0
    %773 = vmatprep.subr.mxu0 0.0
    %774 = vmatpush2.msra.mxu0 0.0
    %775 = vmatprep.subr.mxu0 0.0
    %776 = vmatpush2.msra.mxu0 0.0
    %777 = vmatprep.subr.mxu0 0.0
    %778 = vmatpush2.msra.mxu0 0.0
    %779 = vmatprep.subr.mxu0 0.0
    %780 = vmatpush2.msra.mxu0 0.0
    %781 = vmatprep.subr.mxu0 0.0
    %782 = vmatpush2.msra.mxu0 0.0
    %783 = vmatprep.subr.mxu0 0.0
    %784 = vmatpush2.msra.mxu0 0.0
    %785 = vmatprep.subr.mxu0 0.0
    %786 = vmatpush2.msra.mxu0 0.0
    %787 = vmatprep.subr.mxu0 0.0
    %788 = vmatpush2.msra.mxu0 0.0
    %789 = vmatprep.subr.mxu0 0.0
    %790 = vmatpush2.msra.mxu0 0.0
    %791 = vmatprep.subr.mxu0 0.0
    %792 = vmatpush2.msra.mxu0 0.0
    %793 = vmatprep.mubr.f32.mxu0 0.0
    %794 = vmatmul.mubr.f32.gmra.mxu0 %v727
    %v795 = vpop.f32.mrf.mxu0
    %v796 = vadd.f32 0.0, %v795
    %v797 = vpop.f32.mrf.mxu0
    %v798 = vadd.f32 0.0, %v797
    %799 = vdwg.mxu0
    %v800 = vadd.f32 %v713, %v796
    %v801 = vadd.f32 %v714, %v798
    %v802 = vld [vmem:[%s2] sm:$0xff]
    %v803 = vlaneseq
    %v804 = vshrl.u32 %v803, 7
    %v805 = vsub.s32 0, %v804
    %v806 = vrot.slane %v18, %v805
    %v807 = vlaneseq
    %v808 = vshrl.u32 %v807, 7
    %v809 = vsub.s32 0, %v808
    %v810 = vrot.slane %v19, %v809
    %v811 = vlaneseq
    %v812 = vshrl.u32 %v811, 7
    %v813 = vsub.s32 0, %v812
    %v814 = vrot.slane %v20, %v813
    %818 = vrot.lane.b32.xlu0 %v806, 118
    %v819 = vpop.permute.xlu0 %818
    %820 = vrot.lane.b32.xlu0 %v810, 118
    %v821 = vpop.permute.xlu0 %820
    %822 = vrot.lane.b32.xlu0 %v814, 118
    %v823 = vpop.permute.xlu0 %822
    %v824 = vsel %vm373, %v819, %v821
    %v825 = vsel %vm373, %v821, %v823
    %v828 = vmul.f32 %v800, %v824
    %v829 = vmul.f32 %v801, %v825
    %v830 = vadd.f32 %v828, %v829
    %831 = vadd.xlane.f32.xlu0 %v830
    %v832 = vpop.xlane.xlu0 %831
    %v833 = vmul.f32 %v828, %v800
    %v834 = vmul.f32 %v829, %v801
    %v835 = vadd.f32 %v833, %v834
    %836 = vadd.xlane.f32.xlu0 %v835
    %v837 = vpop.xlane.xlu0 %836
    %v838 = vmul.f32 %v832, 0.011904762
    %v839 = vmul.f32 %v837, 0.011904762
    %v840 = vmul.f32 %v838, %v838
    %v841 = vsub.f32 %v839, %v840
    %v842 = vmax.f32 %v841, 0.0
    %v843 = vadd.f32 %v842, 1e-05
    %v844 = vrsqrt.pop %v843
    %v845 = vmul.f32 %v802, %v844
    %v846 = vmul.f32 %v838, %v845
    %848 = vrot.lane.b32.xlu0 %v846, 1
    %v849 = vpop.permute.xlu0 %848
    %v851 = vsub.f32 %v802, %v849
    %853 = vset.pattern.permute.xlu0 0
    %854 = vperm.xlu0 %853, %v845
    %v855 = vpop.permute.xlu0 %854
    %v857 = vmul.f32 %v800, %v855
    %v858 = vmul.f32 %v801, %v855
    %860 = vset.pattern.permute.xlu0 1
    %861 = vperm.xlu0 %860, %v851
    %v862 = vpop.permute.xlu0 %861
    %v864 = vadd.f32 %v857, %v862
    %v865 = vadd.f32 %v858, %v862
    %v866 = vmax.f32 %v864, 0.0
    %v867 = vmax.f32 %v865, 0.0
    %v868 = vmul.f32 %v866, %v824
    %v869 = vmul.f32 %v867, %v825
    %v870 = vadd.f32 %v868, %v869
    %871 = vadd.xlane.f32.xlu0 %v870
    %v872 = vpop.xlane.xlu0 %871
    %v873 = vmul.f32 %v868, %v866
    %v874 = vmul.f32 %v869, %v867
    %v875 = vadd.f32 %v873, %v874
    %876 = vadd.xlane.f32.xlu0 %v875
    %v877 = vpop.xlane.xlu0 %876
    %v878 = vmul.f32 %v872, 0.011904762
    %v879 = vmul.f32 %v877, 0.011904762
    %v880 = vmul.f32 %v878, %v878
    %v881 = vsub.f32 %v879, %v880
    %v882 = vmax.f32 %v881, 0.0
    %v883 = vadd.f32 %v882, 1e-05
    %v884 = vrsqrt.pop %v883
    %v885 = vmul.f32 %v802, %v884
    %v886 = vmul.f32 %v878, %v885
    %888 = vrot.lane.b32.xlu0 %v886, 1
    %v889 = vpop.permute.xlu0 %888
    %v891 = vsub.f32 %v802, %v889
    %893 = vset.pattern.permute.xlu0 0
    %894 = vperm.xlu0 %893, %v885
    %v895 = vpop.permute.xlu0 %894
    %v897 = vmul.f32 %v866, %v895
    %v898 = vmul.f32 %v867, %v895
    %900 = vset.pattern.permute.xlu0 1
    %901 = vperm.xlu0 %900, %v891
    %v902 = vpop.permute.xlu0 %901
    %v904 = vadd.f32 %v897, %v902
    %v905 = vadd.f32 %v898, %v902
    %v906 = vadd.f32 %v904, %v374
    %v907 = vadd.f32 %v905, %v375
    %v908 = vmax.f32 %v906, 0.0
    %v909 = vmax.f32 %v907, 0.0
    %910 = vst [vmem:[#allocation2] sm:$0xff] %v908
    %911 = vst [vmem:[#allocation2 + $0x8] sm:$0xff] %v909
    // Predicated region
    $region14: #{tpu_custom_call.1} parent=1 // pred_check
      _
    $region15: #{tpu_custom_call.1} parent=1 // pred_check_branch
      %913 = sbr.rel (0) target = $region17
    $region16: #{tpu_custom_call.1} parent=1 // pred_region
      %s915 = ssub.s32 256, 256
      %916 = vsyncadd [#allocation3], %s915
      %s918 = sshll.u32 [#allocation2], 4
      %s919 = int_to_ptr.vmem [resolvable:$true] %s918
      %921 = dma.vmem_to_hbm [thread:$0]  %s919, 256, %s3, [#allocation3]
    $region17: #{tpu_custom_call.1} parent=1 // pred_fallthru
      _
    // Predicated region
    $region18: #{tpu_custom_call.1} parent=1 // pred_check
      _
    $region19: #{tpu_custom_call.1} parent=1 // pred_check_branch
      %923 = sbr.rel (0) target = $region21
    $region20: #{tpu_custom_call.1} parent=1 // pred_region
      %924 = dma.done [#allocation3], 256
    $region21: #{tpu_custom_call.1} parent=1 // pred_fallthru
      _
    %925 = vsyncpa [#allocation3], 1

</llo_original>
